<compile_context>
chip_gen: v7x
topology: tpu7x:2x2x1
jax: 0.10.0
libtpu: 0.0.40
codegen_flags: <defaults>
</compile_context>

<pallas_src>
import math

import jax
import jax.numpy as jnp
from jax import lax
from jax.experimental import pallas as pl
from jax.experimental.pallas import tpu as pltpu

LOSS_WEIGHT = 1.0
ALPHA = 0.01
BETA = 0.01
_NORM_EPS = 1e-12          # F.normalize default eps
_LANE = 128
_SUBLANE = 8


def _round_up(v, m):
    return (v + m - 1) // m * m


def _vmem_capacity_bytes():
    """Generation-aware VMEM capacity (v5e/v6e: 128 MiB, v7x: 64 MiB)."""
    try:
        cap = getattr(pltpu.get_tpu_info(), "vmem_capacity_bytes", None)
        if cap:
            return int(cap)
    except Exception:
        pass
    return 64 << 20            # conservative fallback (v7x-sized)


def _log_sum(t, max_folds=2):
    """sum(log(t)) with vreg-aligned pairing before the log.

    log(a*b) = log(a) + log(b): multiplying contiguous lane halves (128-aligned)
    or sublane halves (8-aligned) needs no relayout and moves work from the
    single EUP slot onto VPU slots with slack.  Values live in (alpha, 2+alpha],
    so <=2 folds (products of <=4 values) stay comfortably inside f32 range.
    """
    folds = 0
    while folds < max_folds and t.shape[1] % (2 * _LANE) == 0:
        h = t.shape[1] // 2
        t = t[:, :h] * t[:, h:]
        folds += 1
    while folds < max_folds and t.shape[0] % (2 * _SUBLANE) == 0:
        h = t.shape[0] // 2
        t = t[:h, :] * t[h:, :]
        folds += 1
    return jnp.sum(jnp.log(t))


def _make_kernel(n, tm, tn, alpha, needs_mask):
    """Per-(row-block, column-block) kernel; all sizes are static Python ints."""
    n_f = float(n)

    def kernel(rows_ref, cols_ref, out_ref):
        i = pl.program_id(0)          # row block    ("parallel": megacore axis)
        k = pl.program_id(1)          # column block ("arbitrary": reduction)

        @pl.when(k == 0)
        def _init():
            out_ref[...] = jnp.zeros_like(out_ref)

        # --- D tile = xn[rows] @ xn[cols].T, f32 accumulation on the MXU ---
        d = lax.dot_general(rows_ref[...], cols_ref[...],
                            (((1,), (1,)), ((), ())),
                            preferred_element_type=jnp.float32)    # (tm, tn)
        # NaN/Inf scrub happens BEFORE the logs (matches torch ordering).
        d = jnp.where(jnp.isfinite(d), d, jnp.float32(0.0))

        # Off-diag term: D[i,j] + alpha                    (weight N)
        # Diag   term:   D[i,i] - D[b,i] + 1 + alpha == (2+alpha) - D[b,i]
        #                (rows were exactly L2-normalized in the wrapper).
        t_off = d + alpha
        t_dia = (2.0 + alpha) - d
        if needs_mask:                 # static: only when N was padded
            row_ids = i * tm + lax.broadcasted_iota(jnp.int32, (tm, 1), 0)
            col_ids = k * tn + lax.broadcasted_iota(jnp.int32, (1, tn), 1)
            valid = (row_ids < n) & (col_ids < n)
            one = jnp.float32(1.0)     # log(1) == 0 -> padded entries drop out
            t_off = jnp.where(valid, t_off, one)
            t_dia = jnp.where(valid, t_dia, one)

        partial = n_f * _log_sum(t_off) + _log_sum(t_dia)
        out_ref[...] += partial        # lane-dense per-row-block accumulator

    return kernel


def inconsistency_loss(x, *, loss_weight=LOSS_WEIGHT, alpha=ALPHA, beta=BETA,
                       block_rows=256, block_cols=1024, mxu_dtype=None):
    """x: (N, C) float array of relation features. Returns scalar f32 loss."""
    n, c = x.shape
    in_dtype = jnp.bfloat16 if x.dtype == jnp.bfloat16 else jnp.float32
    # Opt-in (v5e / very large C): mxu_dtype=jnp.bfloat16 stores the normalized
    # features in bf16 so the MXU runs single-pass bf16 (looser accuracy).
    store_dtype = jnp.dtype(mxu_dtype) if mxu_dtype is not None else jnp.dtype(in_dtype)

    # --- F.normalize(x, p=2, dim=1, eps=1e-12): once, in the wrapper, in f32 ---
    x32 = x.astype(jnp.float32)
    ss = jnp.sum(x32 * x32, axis=1, keepdims=True)
    xn = x32 * lax.rsqrt(jnp.maximum(ss, jnp.float32(_NORM_EPS) ** 2))

    # --- tiling --------------------------------------------------------------
    cp = _round_up(c, _LANE)                         # lane-dense feature axis
    gran = 16 if store_dtype == jnp.bfloat16 else _SUBLANE   # bf16 sublane packing
    tm = min(_round_up(block_rows, gran), _round_up(n, gran))
    if n > gran:                                     # guarantee >=2 row blocks so
        tm = min(tm, _round_up((n + 1) // 2, gran))  # the "parallel" axis spans
    n_pad = _round_up(n, tm)                         # both v7x TensorCores.
    g_rows = n_pad // tm
    # Column tile: largest multiple of tm that divides n_pad and stays within the
    # block_cols budget.  Bounds per-step VMEM to O(tm*tn) for any N.
    max_mult = max(1, _round_up(block_cols, gran) // tm)
    d_mult = 1
    for cand in range(1, g_rows + 1):
        if g_rows % cand == 0 and cand <= max_mult:
            d_mult = cand
    tn = tm * d_mult
    g_cols = n_pad // tn
    needs_mask = n_pad != n

    # Zero padding changes neither row norms nor dot products.
    xp = jnp.zeros((n_pad, cp), store_dtype).at[:n, :c].set(xn.astype(store_dtype))

    kernel = _make_kernel(n, tm, tn, float(alpha), needs_mask)

    itemsize = jnp.dtype(store_dtype).itemsize
    est_vmem = (2 * (tm + tn) * cp * itemsize        # double-buffered input tiles
                + 2 * _SUBLANE * _LANE * 4           # output accumulator block
                + 8 * tm * tn * 4                    # D tile + log temporaries
                + (2 << 20))
    vmem_limit = int(min(max(est_vmem, 16 << 20),
                         int(_vmem_capacity_bytes() * 0.8)))

    cost = pl.CostEstimate(
        flops=2 * n_pad * n_pad * cp,
        transcendentals=2 * n * n,                   # EUP logs: the real bottleneck
        bytes_accessed=(g_rows + 1) * n_pad * cp * itemsize
                       + g_rows * _SUBLANE * _LANE * 4)

    partials = pl.pallas_call(
        kernel,
        out_shape=jax.ShapeDtypeStruct((g_rows, _SUBLANE, _LANE), jnp.float32),
        grid_spec=pltpu.PrefetchScalarGridSpec(
            num_scalar_prefetch=0,
            grid=(g_rows, g_cols),
            in_specs=[
                pl.BlockSpec((tm, cp), lambda i, k: (i, 0)),   # row tile (index is
                                                               # constant over k ->
                                                               # not re-fetched)
                pl.BlockSpec((tn, cp), lambda i, k: (k, 0)),   # column tile
            ],
            out_specs=pl.BlockSpec((1, _SUBLANE, _LANE), lambda i, k: (i, 0, 0)),
        ),
        compiler_params=pltpu.CompilerParams(
            dimension_semantics=("parallel", "arbitrary"),
            vmem_limit_bytes=vmem_limit),
        cost_estimate=cost,
    )(xp, xp)

    # Constant pieces folded once outside the kernel: subtract N*B with
    # B = n*log(1+alpha) (diag(D) == 1 for normalized rows), then the affine
    # (+beta, *loss_weight) part of the mean.
    log_sum = jnp.sum(partials[:, 0, 0]) - float(n) ** 2 * math.log(1.0 + alpha)
    return (loss_weight * (beta - log_sum / float(n) ** 3)).astype(jnp.float32)


if __name__ == "__main__":
    key = jax.random.PRNGKey(0)
    N, C = 20, 40
    # Non-negative features keep all cosine similarities > -alpha so the log()
    # stays finite (signed random features NaN the ORIGINAL torch loss too).
    feat = jnp.abs(jax.random.normal(key, (N, C), dtype=jnp.float32)) + 0.1

    loss_default = inconsistency_loss(feat)                             # 2 row blocks
    loss_rows = inconsistency_loss(feat, block_rows=8)                  # 3 row blocks
    loss_tiled = inconsistency_loss(feat, block_rows=8, block_cols=8)   # 3x3 grid, k-reduction
    jax.block_until_ready((loss_default, loss_rows, loss_tiled))

    # Pure-JAX reference of the exact torch math (materializes the (N,N,N) tensor).
    xn = feat / jnp.maximum(jnp.linalg.norm(feat, axis=1, keepdims=True), _NORM_EPS)
    d = jnp.matmul(xn, xn.T, precision=jax.lax.Precision.HIGHEST)
    d = jnp.where(jnp.isfinite(d), d, 0.0)
    eye = jnp.eye(N, dtype=d.dtype)
    t = d[None, :, :] - d[:, :, None] * eye[None, :, :] + eye[None, :, :]
    loss_ref = jnp.mean((-jnp.log(t + ALPHA) + BETA) * LOSS_WEIGHT)

    assert bool(jnp.isfinite(loss_ref)), loss_ref
    for name, val in (("default", loss_default), ("rows", loss_rows),
                      ("tiled", loss_tiled)):
        assert jnp.allclose(val, loss_ref, rtol=1e-4, atol=1e-4), (name, val, loss_ref)
    print("KERNEL_OK")
</pallas_src>

<mosaic_0001>
module attributes {stable_mosaic.version = 11 : i64} {
  func.func @kernel(%arg0: i32, %arg1: i32, %arg2: memref<16x128xf32, #tpu.memory_space<vmem>>, %arg3: memref<32x128xf32, #tpu.memory_space<vmem>>, %arg4: memref<1x8x128xf32, #tpu.memory_space<vmem>>) attributes {dimension_semantics = [#tpu.dimension_semantics<parallel>, #tpu.dimension_semantics<arbitrary>], iteration_bounds = array<i64: 2, 1>, scalar_prefetch = 0 : i64, scratch_operands = 0 : i64, tpu.core_type = #tpu.core_type<tc>, window_params = [{transform_indices = @transform_0, window_bounds = array<i64: 16, 128>}, {transform_indices = @transform_1, window_bounds = array<i64: 32, 128>}, {transform_indices = @transform_2, window_bounds = array<i64: 1, 8, 128>}]} {
    %c0_i32 = arith.constant 0 : i32
    %0 = arith.cmpi eq, %arg1, %c0_i32 : i32
    %1 = arith.extui %0 : i1 to i32
    %c0_i32_0 = arith.constant 0 : i32
    %2 = arith.cmpi ne, %1, %c0_i32_0 : i32
    scf.if %2 {
      %cst_20 = arith.constant 0.000000e+00 : f32
      %55 = vector.broadcast %cst_20 : f32 to vector<1x8x128xf32>
      %c0_21 = arith.constant 0 : index
      %c0_22 = arith.constant 0 : index
      %c0_23 = arith.constant 0 : index
      %56 = vector.load %arg4[%c0_21, %c0_22, %c0_23] : memref<1x8x128xf32, #tpu.memory_space<vmem>>, vector<1x8x128xf32>
      tpu.vector_store %arg4[%c0_21, %c0_22, %c0_23], %55 {strides = array<i32>} : memref<1x8x128xf32, #tpu.memory_space<vmem>>, vector<1x8x128xf32>,
    } else {
    }
    %c0 = arith.constant 0 : index
    %c0_1 = arith.constant 0 : index
    %3 = vector.load %arg2[%c0, %c0_1] : memref<16x128xf32, #tpu.memory_space<vmem>>, vector<16x128xf32>
    %c0_2 = arith.constant 0 : index
    %c0_3 = arith.constant 0 : index
    %4 = vector.load %arg3[%c0_2, %c0_3] : memref<32x128xf32, #tpu.memory_space<vmem>>, vector<32x128xf32>
    %cst = arith.constant dense<0.000000e+00> : vector<16x32xf32>
    %5 = tpu.matmul %3, %4, %cst {dimension_numbers = #tpu.dot_dimension_numbers<[1], [1], [0], [0], [0, 0, 1, 0], [], []>} : vector<16x128xf32>, vector<32x128xf32>, vector<16x32xf32> -> vector<16x32xf32>
    %6 = tpu.weird %5 : vector<16x32xf32> -> vector<16x32xi1>
    %cst_4 = arith.constant dense<true> : vector<16x32xi1>
    %7 = arith.xori %6, %cst_4 : vector<16x32xi1>
    %cst_5 = arith.constant 0.000000e+00 : f32
    %8 = vector.broadcast %cst_5 : f32 to vector<16x32xf32>
    %9 = arith.select %7, %5, %8 : vector<16x32xi1>, vector<16x32xf32>
    %cst_6 = arith.constant 0.00999999977 : f32
    %10 = vector.broadcast %cst_6 : f32 to vector<16x32xf32>
    %11 = arith.addf %9, %10 : vector<16x32xf32>
    %cst_7 = arith.constant 2.010000e+00 : f32
    %12 = vector.broadcast %cst_7 : f32 to vector<16x32xf32>
    %13 = arith.subf %12, %9 : vector<16x32xf32>
    %c16_i32 = arith.constant 16 : i32
    %14 = arith.muli %arg0, %c16_i32 : i32
    %15 = tpu.iota {dimensions = array<i32: 0>} : vector<16x1xi32>
    %16 = vector.broadcast %14 : i32 to vector<16x1xi32>
    %17 = arith.addi %16, %15 : vector<16x1xi32>
    %c32_i32 = arith.constant 32 : i32
    %18 = arith.muli %arg1, %c32_i32 : i32
    %19 = tpu.iota {dimensions = array<i32: 1>} : vector<1x32xi32>
    %20 = vector.broadcast %18 : i32 to vector<1x32xi32>
    %21 = arith.addi %20, %19 : vector<1x32xi32>
    %c20_i32 = arith.constant 20 : i32
    %22 = vector.broadcast %c20_i32 : i32 to vector<16x1xi32>
    %23 = arith.cmpi slt, %17, %22 : vector<16x1xi32>
    %c20_i32_8 = arith.constant 20 : i32
    %24 = vector.broadcast %c20_i32_8 : i32 to vector<1x32xi32>
    %25 = arith.cmpi slt, %21, %24 : vector<1x32xi32>
    %26 = vector.broadcast %23 : vector<16x1xi1> to vector<16x32xi1>
    %27 = vector.broadcast %25 : vector<1x32xi1> to vector<16x32xi1>
    %28 = arith.andi %26, %27 : vector<16x32xi1>
    %cst_9 = arith.constant 1.000000e+00 : f32
    %29 = vector.broadcast %cst_9 : f32 to vector<16x32xf32>
    %30 = arith.select %28, %11, %29 : vector<16x32xi1>, vector<16x32xf32>
    %cst_10 = arith.constant 1.000000e+00 : f32
    %31 = vector.broadcast %cst_10 : f32 to vector<16x32xf32>
    %32 = arith.select %28, %13, %31 : vector<16x32xi1>, vector<16x32xf32>
    %33 = vector.extract_strided_slice %30 {offsets = [0, 0], sizes = [8, 32], strides = [1, 1]} : vector<16x32xf32> to vector<8x32xf32>
    %34 = vector.extract_strided_slice %30 {offsets = [8, 0], sizes = [8, 32], strides = [1, 1]} : vector<16x32xf32> to vector<8x32xf32>
    %35 = arith.mulf %33, %34 : vector<8x32xf32>
    %36 = math.log %35 : vector<8x32xf32>
    %37 = vector.shape_cast %36 : vector<8x32xf32> to vector<1x8x32xf32>
    %cst_11 = arith.constant dense<0.000000e+00> : vector<1xf32>
    %38 = vector.multi_reduction <add>, %37, %cst_11 [1, 2] : vector<1x8x32xf32> to vector<1xf32>
    %39 = vector.shape_cast %38 : vector<1xf32> to vector<1x1x1xf32>
    %40 = vector.extract %39[0, 0, 0] : f32 from vector<1x1x1xf32>
    %cst_12 = arith.constant 2.000000e+01 : f32
    %41 = arith.mulf %cst_12, %40 : f32
    %42 = vector.extract_strided_slice %32 {offsets = [0, 0], sizes = [8, 32], strides = [1, 1]} : vector<16x32xf32> to vector<8x32xf32>
    %43 = vector.extract_strided_slice %32 {offsets = [8, 0], sizes = [8, 32], strides = [1, 1]} : vector<16x32xf32> to vector<8x32xf32>
    %44 = arith.mulf %42, %43 : vector<8x32xf32>
    %45 = math.log %44 : vector<8x32xf32>
    %46 = vector.shape_cast %45 : vector<8x32xf32> to vector<1x8x32xf32>
    %cst_13 = arith.constant dense<0.000000e+00> : vector<1xf32>
    %47 = vector.multi_reduction <add>, %46, %cst_13 [1, 2] : vector<1x8x32xf32> to vector<1xf32>
    %48 = vector.shape_cast %47 : vector<1xf32> to vector<1x1x1xf32>
    %49 = vector.extract %48[0, 0, 0] : f32 from vector<1x1x1xf32>
    %50 = arith.addf %41, %49 : f32
    %c0_14 = arith.constant 0 : index
    %c0_15 = arith.constant 0 : index
    %c0_16 = arith.constant 0 : index
    %51 = vector.load %arg4[%c0_14, %c0_15, %c0_16] : memref<1x8x128xf32, #tpu.memory_space<vmem>>, vector<1x8x128xf32>
    %52 = vector.broadcast %50 : f32 to vector<1x8x128xf32>
    %53 = arith.addf %51, %52 : vector<1x8x128xf32>
    %c0_17 = arith.constant 0 : index
    %c0_18 = arith.constant 0 : index
    %c0_19 = arith.constant 0 : index
    %54 = vector.load %arg4[%c0_17, %c0_18, %c0_19] : memref<1x8x128xf32, #tpu.memory_space<vmem>>, vector<1x8x128xf32>
    tpu.vector_store %arg4[%c0_17, %c0_18, %c0_19], %53 {strides = array<i32>} : memref<1x8x128xf32, #tpu.memory_space<vmem>>, vector<1x8x128xf32>,
    return
  }
  func.func @transform_0(%arg0: i32, %arg1: i32) -> (i32, i32) {
    %c0_i32 = arith.constant 0 : i32
    %c0_i32_0 = arith.constant 0 : i32
    return %arg0, %c0_i32 : i32, i32
  }
  func.func @transform_1(%arg0: i32, %arg1: i32) -> (i32, i32) {
    %c0_i32 = arith.constant 0 : i32
    %c0_i32_0 = arith.constant 0 : i32
    return %arg1, %c0_i32 : i32, i32
  }
  func.func @transform_2(%arg0: i32, %arg1: i32) -> (i32, i32, i32) {
    %c0_i32 = arith.constant 0 : i32
    %c0_i32_0 = arith.constant 0 : i32
    %c0_i32_1 = arith.constant 0 : i32
    return %arg0, %c0_i32, %c0_i32_0 : i32, i32, i32
  }
}

</mosaic_0001>

<llo_original>
// kernel: tpu_custom_call.1
$region0: #{tpu_custom_call.1}
  #allocation0 [shape = 'u32[]', space=smem, size = 0x4, offset = 0x4, fixed_abs, tag = 'smem constant byte address 0x4 - core index']
  #allocation1 [shape = 'u32[144,128]{1,0:T(1,128)}', space=vmem, size = 0x12000, scoped, tag = 'internal scratch']
  %s0 = inlined_call_operand.hbm [shape: f32[32,128], index: 0, kind: input, shape index: {}]
  %s1 = inlined_call_operand.hbm [shape: f32[32,128], index: 1, kind: input, shape index: {}]
  %s2 = inlined_call_operand.hbm [shape: f32[2,8,128], index: 2, kind: output, shape index: {}]
  %s3 = sld [smem:[#allocation0]]
  $region53: #{tpu_custom_call.1} parent=0
    _
  %s5 = ssub.s32 1, %s3
  %s6 = scalar_select 0, %s5, %s3
  $region1: #{tpu_custom_call.1} parent=0
    #allocation2 [shape = 'u8[16384]{0}', space=vmem, size = 0x4000, scoped, tag = 'input window, operand 0']
    #allocation3 [shape = 's32[2]{0}', space=sflag, size = 0x8, scoped, tag = 'scoped memory for tpu_custom_call.1']
    #allocation4 [shape = 's32[2]{0}', space=sflag, size = 0x8, scoped, tag = 'scoped memory for tpu_custom_call.1']
    #allocation5 [shape = 'u8[16384]{0}', space=vmem, size = 0x4000, scoped, tag = 'input window, operand 1, single buffered']
    #allocation6 [shape = 's32[1]{0}', space=sflag, size = 0x4, scoped, tag = 'scoped memory for tpu_custom_call.1']
    #allocation7 [shape = 'u8[8192]{0}', space=vmem, size = 0x2000, scoped, tag = 'output window, operand 0']
    %7 = vsyncpa [#allocation3], 0
    %s8 = scalar_lea.sflag [#allocation3], 1
    %9 = vsyncpa %s8, 0
    %10 = vsyncpa [#allocation6], 0
    %11 = vsyncpa [#allocation4], 0
    %s12 = scalar_lea.sflag [#allocation4], 1
    %13 = vsyncpa %s12, 0
    loop: start=0, step=1, limit=4
    $region2: #{tpu_custom_call.1} parent=1 // loop_pre_header
      _
    $region3: #{tpu_custom_call.1} parent=1 // loop_header
      %s15 = sphi 0, %s19
      %p16 = scmp.ge.s32.totalorder %s15, 4
      %s22 = sphi 0, %s34
      %s23 = sphi 0, %s30
      %s24 = sphi 0, %s22
      %s25 = sphi 0, %s23
      %s26 = sphi 0, %s24
      %s27 = sphi 0, %s25
      %s37 = sphi 0, %s39
      %s40 = sphi 0, %s37
      %s41 = sphi 0, %s40
      %s57 = sphi 0, %s41
      %s63 = sphi 0, %s65
      %s66 = sphi 0, %s63
      %s67 = sphi 0, %s66
      %s83 = sphi 0, %s67
      %s89 = sphi 0, %s91
      %s92 = sphi 0, %s89
      %s93 = sphi 0, %s92
      %s109 = sphi 0, %s93
    $region4: #{tpu_custom_call.1} parent=1 // loop_header_branch
      %18 = sbr.rel (%p16) target = $region8
    $region5: #{tpu_custom_call.1} parent=1 // loop_body
      %s20 = ssub.s32 %s15, 1
      %s21 = ssub.s32 %s15, 2
      %s28 = sadd.s32 1, %s23
      %p29 = scmp.ge.s32.totalorder %s28, 1
      %s30 = scalar_select %p29, 0, %s28
      %s31 = sadd.s32 1, %s22
      %s32 = scalar_select %p29, %s31, %s22
      %p33 = scmp.ge.s32.totalorder %s32, 2
      %s34 = scalar_select %p33, 0, %s32
      %s35 = ssub.s32 %s22, %s34
      %p36 = scmp.eq.s32.totalorder %s35, 0
      %s38 = sadd.s32 %s37, 1
      %s39 = scalar_select %p36, %s37, %s38
      %p42 = pneg %p36
      %p43 = scmp.eq.s32.totalorder %s15, 1
      %p44 = por %p42, %p43
      %p45 = scmp.ne.s32.totalorder %s37, %s40
      %p46 = scmp.eq.s32.totalorder %s15, 0
      %p47 = por %p45, %p46
      %p48 = scmp.ne.s32.totalorder %s37, %s40
      %p49 = scmp.eq.s32.totalorder %s20, 1
      %p50 = por %p48, %p49
      %p51 = scmp.ne.s32.totalorder %s40, %s41
      %p52 = scmp.eq.s32.totalorder %s20, 0
      %p53 = por %p51, %p52
      %p54 = scmp.ne.s32.totalorder %s40, %s41
      %p55 = scmp.eq.s32.totalorder %s21, 1
      %p56 = por %p54, %p55
      %p58 = scmp.ne.s32.totalorder %s41, %s57
      %p59 = scmp.eq.s32.totalorder %s21, 0
      %p60 = por %p58, %p59
      %s61 = ssub.s32 %s23, %s30
      %p62 = scmp.eq.s32.totalorder %s61, 0
      %s64 = sadd.s32 %s63, 1
      %s65 = scalar_select %p62, %s63, %s64
      %p68 = pneg %p62
      %p69 = scmp.eq.s32.totalorder %s15, 1
      %p70 = por %p68, %p69
      %p71 = scmp.ne.s32.totalorder %s63, %s66
      %p72 = scmp.eq.s32.totalorder %s15, 0
      %p73 = por %p71, %p72
      %p74 = scmp.ne.s32.totalorder %s63, %s66
      %p75 = scmp.eq.s32.totalorder %s20, 1
      %p76 = por %p74, %p75
      %p77 = scmp.ne.s32.totalorder %s66, %s67
      %p78 = scmp.eq.s32.totalorder %s20, 0
      %p79 = por %p77, %p78
      %p80 = scmp.ne.s32.totalorder %s66, %s67
      %p81 = scmp.eq.s32.totalorder %s21, 1
      %p82 = por %p80, %p81
      %p84 = scmp.ne.s32.totalorder %s67, %s83
      %p85 = scmp.eq.s32.totalorder %s21, 0
      %p86 = por %p84, %p85
      %s87 = ssub.s32 %s22, %s34
      %p88 = scmp.eq.s32.totalorder %s87, 0
      %s90 = sadd.s32 %s89, 1
      %s91 = scalar_select %p88, %s89, %s90
      %p94 = pneg %p88
      %p95 = scmp.eq.s32.totalorder %s15, 1
      %p96 = por %p94, %p95
      %p97 = scmp.ne.s32.totalorder %s89, %s92
      %p98 = scmp.eq.s32.totalorder %s15, 0
      %p99 = por %p97, %p98
      %p100 = scmp.ne.s32.totalorder %s89, %s92
      %p101 = scmp.eq.s32.totalorder %s20, 1
      %p102 = por %p100, %p101
      %p103 = scmp.ne.s32.totalorder %s92, %s93
      %p104 = scmp.eq.s32.totalorder %s20, 0
      %p105 = por %p103, %p104
      %p106 = scmp.ne.s32.totalorder %s92, %s93
      %p107 = scmp.eq.s32.totalorder %s21, 1
      %p108 = por %p106, %p107
      %p110 = scmp.ne.s32.totalorder %s93, %s109
      %p111 = scmp.eq.s32.totalorder %s21, 0
      %p112 = por %p110, %p111
      %p113 = scmp.le.s32.totalorder 1, %s15
      %p114 = scmp.lt.s32.totalorder %s15, 3
      %p115 = pnand %p113, %p114
      %p116 = pneg %p115
      // Predicated region
      $region9: #{tpu_custom_call.1} parent=5 // pred_check
        _
      $region10: #{tpu_custom_call.1} parent=5 // pred_check_branch
        %118 = sbr.rel (%p115) target = $region12
      $region11: #{tpu_custom_call.1} parent=5 // pred_region
        %s119 = ssub.s32 %s15, 1
        // Predicated region
        $region13: #{tpu_custom_call.1} parent=11 // pred_check
          %p120 = pneg %p79
        $region14: #{tpu_custom_call.1} parent=11 // pred_check_branch
          %122 = sbr.rel (%p120) target = $region16
        $region15: #{tpu_custom_call.1} parent=11 // pred_region
          %s123 = smul.u32 4, %s25
          %s125 = ssub.s32 512, 512
          %126 = vsyncadd [#allocation6], %s125
          %s127 = smul.addr %s123, 128
          %s128 = scalar_lea.hbm %s1, %s127
          %s129 = sshll.u32 [#allocation5], 4
          %s130 = int_to_ptr.vmem [resolvable:$true] %s129
          %135 = dma.hbm_to_vmem [thread:$0]  %s128, 512, %s130, [#allocation6], 128, 128, 8
        $region16: #{tpu_custom_call.1} parent=11 // pred_fallthru
          _
      $region12: #{tpu_custom_call.1} parent=5 // pred_fallthru
        _
      %p136 = scmp.lt.s32.totalorder %s15, 2
      // Predicated region
      $region17: #{tpu_custom_call.1} parent=5 // pred_check
        %p137 = pneg %p136
      $region18: #{tpu_custom_call.1} parent=5 // pred_check_branch
        %139 = sbr.rel (%p137) target = $region20
      $region19: #{tpu_custom_call.1} parent=5 // pred_region
        // Predicated region
        $region21: #{tpu_custom_call.1} parent=19 // pred_check
          %p140 = pneg %p47
        $region22: #{tpu_custom_call.1} parent=19 // pred_check_branch
          %142 = sbr.rel (%p140) target = $region24
        $region23: #{tpu_custom_call.1} parent=19 // pred_region
          %s143 = sand.u32 %s37, 1
          %s144 = scalar_lea.sflag [#allocation3], %s143
          %s145 = sand.u32 %s37, 1
          %s146 = smul.addr %s145, 16
          %s147 = scalar_lea.vmem [#allocation2], %s146
          %s148 = smul.u32 2, %s22
          %s150 = ssub.s32 256, 256
          %151 = vsyncadd %s144, %s150
          %s152 = smul.addr %s148, 128
          %s153 = scalar_lea.hbm %s0, %s152
          %s154 = sshll.u32 %s147, 4
          %s155 = int_to_ptr.vmem [resolvable:$true] %s154
          %160 = dma.hbm_to_vmem [thread:$0]  %s153, 256, %s155, %s144, 128, 128, 8
        $region24: #{tpu_custom_call.1} parent=19 // pred_fallthru
          _
      $region20: #{tpu_custom_call.1} parent=5 // pred_fallthru
        _
      %p161 = scmp.le.s32.totalorder 1, %s15
      %p162 = scmp.lt.s32.totalorder %s15, 3
      %p163 = pnand %p161, %p162
      %p164 = pneg %p163
      // Predicated region
      $region25: #{tpu_custom_call.1} parent=5 // pred_check
        _
      $region26: #{tpu_custom_call.1} parent=5 // pred_check_branch
        %166 = sbr.rel (%p163) target = $region28
      $region27: #{tpu_custom_call.1} parent=5 // pred_region
        %s167 = ssub.s32 %s15, 1
        %s168 = sand.u32 %s40, 1
        %s169 = scalar_lea.sflag [#allocation3], %s168
        %s170 = sand.u32 %s40, 1
        %s171 = smul.addr %s170, 16
        %s172 = scalar_lea.vmem [#allocation2], %s171
        // Predicated region
        $region29: #{tpu_custom_call.1} parent=27 // pred_check
          %p173 = pneg %p53
        $region30: #{tpu_custom_call.1} parent=27 // pred_check_branch
          %175 = sbr.rel (%p173) target = $region32
        $region31: #{tpu_custom_call.1} parent=27 // pred_region
          %176 = dma.done %s169, 256
        $region32: #{tpu_custom_call.1} parent=27 // pred_fallthru
          _
        // Predicated region
        $region33: #{tpu_custom_call.1} parent=27 // pred_check
          %p177 = pneg %p79
        $region34: #{tpu_custom_call.1} parent=27 // pred_check_branch
          %179 = sbr.rel (%p177) target = $region36
        $region35: #{tpu_custom_call.1} parent=27 // pred_region
          %180 = dma.done [#allocation6], 512
        $region36: #{tpu_custom_call.1} parent=27 // pred_fallthru
          _
        %s181 = sand.u32 %s40, 1
        %s182 = scalar_lea.sflag [#allocation3], %s181
        %s183 = sand.u32 %s40, 1
        %s184 = smul.addr %s183, 16
        %s185 = scalar_lea.vmem [#allocation2], %s184
        %p186 = pneg %p53
        %p187 = pneg %p50
        %p188 = pneg %p79
        %p189 = pneg %p76
        %p190 = pneg %p105
        %p191 = pneg %p102
        %s192 = sand.u32 %s92, 1
        %s193 = scalar_lea.sflag [#allocation4], %s192
        %s194 = sand.u32 %s92, 1
        %s195 = smul.addr %s194, 8
        %s196 = scalar_lea.vmem [#allocation7], %s195
        %s197 = smul.u32 2, %s24
        %s198 = smul.u32 4, %s25
        %p199 = scmp.eq.s32.totalorder %s25, 0
        // Predicated region
        $region37: #{tpu_custom_call.1} parent=27 // pred_check
          %p200 = pneg %p199
        $region38: #{tpu_custom_call.1} parent=27 // pred_check_branch
          %202 = sbr.rel (%p200) target = $region40
        $region39: #{tpu_custom_call.1} parent=27 // pred_region
          %203 = vst [vmem:[%s196] sm:$0xff] 0.0
        $region40: #{tpu_custom_call.1} parent=27 // pred_fallthru
          _
        %v204 = vld [vmem:[%s172] sm:$0xff]
        %v205 = vld [vmem:[%s172 + $0x8] sm:$0xff]
        %v206 = vld [vmem:[#allocation5] sm:$0xff]
        %v207 = vld [vmem:[#allocation5 + $0x8] sm:$0xff]
        %v208 = vld [vmem:[#allocation5 + $0x10] sm:$0xff]
        %v209 = vld [vmem:[#allocation5 + $0x18] sm:$0xff]
        %210 = vmatprep.subr.mxu0 0.0
        %211 = vmatpush1.xpose.msra.mxu0 %v206
        %212 = vmatprep.subr.mxu0 0.0
        %213 = vmatpush1.xpose.msra.mxu0 %v207
        %214 = vmatprep.subr.mxu0 0.0
        %215 = vmatpush1.xpose.msra.mxu0 %v208
        %216 = vmatprep.subr.mxu0 0.0
        %217 = vmatpush1.xpose.msra.mxu0 %v209
        %218 = vmatprep.subr.mxu0 0.0
        %219 = vmatpush1.xpose.msra.mxu0 0.0
        %220 = vmatprep.subr.mxu0 0.0
        %221 = vmatpush1.xpose.msra.mxu0 0.0
        %222 = vmatprep.subr.mxu0 0.0
        %223 = vmatpush1.xpose.msra.mxu0 0.0
        %224 = vmatprep.subr.mxu0 0.0
        %225 = vmatpush1.xpose.msra.mxu0 0.0
        %226 = vmatprep.subr.mxu0 0.0
        %227 = vmatpush1.xpose.msra.mxu0 0.0
        %228 = vmatprep.subr.mxu0 0.0
        %229 = vmatpush1.xpose.msra.mxu0 0.0
        %230 = vmatprep.subr.mxu0 0.0
        %231 = vmatpush1.xpose.msra.mxu0 0.0
        %232 = vmatprep.subr.mxu0 0.0
        %233 = vmatpush1.xpose.msra.mxu0 0.0
        %234 = vmatprep.subr.mxu0 0.0
        %235 = vmatpush1.xpose.msra.mxu0 0.0
        %236 = vmatprep.subr.mxu0 0.0
        %237 = vmatpush1.xpose.msra.mxu0 0.0
        %238 = vmatprep.subr.mxu0 0.0
        %239 = vmatpush1.xpose.msra.mxu0 0.0
        %240 = vmatprep.subr.mxu0 0.0
        %241 = vmatpush1.xpose.msra.mxu0 0.0
        %242 = vmatprep.subr.mxu0 0.0
        %243 = vmatpush1.xpose.msra.mxu0 0.0
        %244 = vmatprep.subr.mxu0 0.0
        %245 = vmatpush1.xpose.msra.mxu0 0.0
        %246 = vmatprep.subr.mxu0 0.0
        %247 = vmatpush1.xpose.msra.mxu0 0.0
        %248 = vmatprep.subr.mxu0 0.0
        %249 = vmatpush1.xpose.msra.mxu0 0.0
        %250 = vmatprep.subr.mxu0 0.0
        %251 = vmatpush1.xpose.msra.mxu0 0.0
        %252 = vmatprep.subr.mxu0 0.0
        %253 = vmatpush1.xpose.msra.mxu0 0.0
        %254 = vmatprep.subr.mxu0 0.0
        %255 = vmatpush1.xpose.msra.mxu0 0.0
        %256 = vmatprep.subr.mxu0 0.0
        %257 = vmatpush1.xpose.msra.mxu0 0.0
        %258 = vmatprep.subr.mxu0 0.0
        %259 = vmatpush1.xpose.msra.mxu0 0.0
        %260 = vmatprep.subr.mxu0 0.0
        %261 = vmatpush1.xpose.msra.mxu0 0.0
        %262 = vmatprep.subr.mxu0 0.0
        %263 = vmatpush1.xpose.msra.mxu0 0.0
        %264 = vmatprep.subr.mxu0 0.0
        %265 = vmatpush1.xpose.msra.mxu0 0.0
        %266 = vmatprep.subr.mxu0 0.0
        %267 = vmatpush1.xpose.msra.mxu0 0.0
        %268 = vmatprep.subr.mxu0 0.0
        %269 = vmatpush1.xpose.msra.mxu0 0.0
        %270 = vmatprep.subr.mxu0 0.0
        %271 = vmatpush1.xpose.msra.mxu0 0.0
        %272 = vmatprep.subr.mxu0 0.0
        %273 = vmatpush1.xpose.msra.mxu0 0.0
        %274 = vmatprep.mubr.f32.mxu0 0.0
        %275 = vmatmul.mubr.f32.gmra.mrb[0].mxu0 %v204
        %v276 = vpop.f32.mrb[0].mxu0
        %v277 = vadd.f32 0.0, %v276
        %v278 = vpop.f32.mrb[0].mxu0
        %279 = vmatprep.mubr.f32.mxu0 0.0
        %280 = vmatmul.mubr.f32.gmra.mrb[0].mxu0 %v205
        %v281 = vpop.f32.mrb[0].mxu0
        %v282 = vadd.f32 0.0, %v281
        %v283 = vpop.f32.mrb[0].mxu0
        %284 = vdwg.mxu0
        %vm285 = vweird.f32 %v277
        %vm286 = vweird.f32 %v282
        %vm287 = vmxor %vm285, 1
        %vm288 = vmxor %vm286, 1
        %v289 = vsel %vm287, %v277, 0.0
        %v290 = vsel %vm288, %v282, 0.0
        %v291 = vadd.f32 %v289, 0.01
        %v292 = vadd.f32 %v290, 0.01
        %v293 = vsub.f32 2.01, %v289
        %v294 = vsub.f32 2.01, %v290
        %s295 = smul.u32 %s24, 16
        %v296 = vlaneseq
        %v297 = vshrl.u32 %v296, 7
        %v298 = vadd.s32 %v297, 8
        %v299 = vstv %s295
        %v300 = vadd.s32 %v299, %v297
        %v301 = vadd.s32 %v299, %v298
        %s302 = smul.u32 %s25, 32
        %v303 = vlaneseq
        %v304 = vand.u32 %v303, 127
        %v305 = vstv %s302
        %v306 = vadd.s32 %v305, %v304
        %vm307 = vcmp.lt.s32.totalorder %v300, 20
        %vm308 = vcmp.lt.s32.totalorder %v301, 20
        %vm309 = vcmp.lt.s32.totalorder %v306, 20
        %v310 = vsel %vm307, 1, 0
        %v311 = vsel %vm308, 1, 0
        %vm312 = vcmp.eq.s32.totalorder %v310, 1
        %vm313 = vcmp.eq.s32.totalorder %v311, 1
        %v314 = vsel %vm309, 1, 0
        %vm315 = vcmp.eq.s32.totalorder %v314, 1
        %vm316 = vmand %vm312, %vm315
        %vm317 = vmand %vm313, %vm315
        %v318 = vsel %vm316, %v291, 1.0
        %v319 = vsel %vm317, %v292, 1.0
        %v320 = vsel %vm316, %v293, 1.0
        %v321 = vsel %vm317, %v294, 1.0
        %v322 = vmul.f32 %v318, %v319
        %v323 = vlog2.pop %v322
        %v324 = vmul.f32 %v323, 0.6931472
        %vm325 = vcmask 261120
        %v326 = vsel %vm325, %v324, 0.0
        %327 = vadd.xlane.f32.xlu0 %v326
        %v328 = vpop.xlane.xlu0 %327
        %v329 = vrot.slane %v328, 4
        %v330 = vadd.f32 %v328, %v329
        %v331 = vrot.slane %v330, 2
        %v332 = vadd.f32 %v330, %v331
        %v333 = vrot.slane %v332, 1
        %v334 = vadd.f32 %v332, %v333
        %s335 = vtos %v334
        %s336 = smul.f32 %s335, 20.0
        %v337 = vmul.f32 %v320, %v321
        %v338 = vlog2.pop %v337
        %v339 = vmul.f32 %v338, 0.6931472
        %v340 = vsel %vm325, %v339, 0.0
        %341 = vadd.xlane.f32.xlu0 %v340
        %v342 = vpop.xlane.xlu0 %341
        %v343 = vrot.slane %v342, 4
        %v344 = vadd.f32 %v342, %v343
        %v345 = vrot.slane %v344, 2
        %v346 = vadd.f32 %v344, %v345
        %v347 = vrot.slane %v346, 1
        %v348 = vadd.f32 %v346, %v347
        %s349 = vtos %v348
        %s350 = sadd.f32 %s336, %s349
        %v351 = vld [vmem:[%s196] sm:$0xff]
        %v352 = vstv %s350
        %v353 = vadd.f32 %v351, %v352
        %354 = vst [vmem:[%s196] sm:$0xff] %v353
        %s355 = sand.u32 %s92, 1
        %s356 = scalar_lea.sflag [#allocation4], %s355
        %s357 = sand.u32 %s92, 1
        %s358 = smul.addr %s357, 8
        %s359 = scalar_lea.vmem [#allocation7], %s358
        // Predicated region
        $region41: #{tpu_custom_call.1} parent=27 // pred_check
          %p360 = pneg %p102
        $region42: #{tpu_custom_call.1} parent=27 // pred_check_branch
          %362 = sbr.rel (%p360) target = $region44
        $region43: #{tpu_custom_call.1} parent=27 // pred_region
          %s364 = ssub.s32 128, 128
          %365 = vsyncadd %s356, %s364
          %s366 = smul.addr %s24, 128
          %s367 = scalar_lea.hbm %s2, %s366
          %s369 = sshll.u32 %s359, 4
          %s370 = int_to_ptr.vmem [resolvable:$true] %s369
          %372 = dma.vmem_to_hbm [thread:$0]  %s370, 128, %s367, %s356
        $region44: #{tpu_custom_call.1} parent=27 // pred_fallthru
          _
      $region28: #{tpu_custom_call.1} parent=5 // pred_fallthru
        _
      %p373 = scmp.le.s32.totalorder 2, %s15
      // Predicated region
      $region45: #{tpu_custom_call.1} parent=5 // pred_check
        %p374 = pneg %p373
      $region46: #{tpu_custom_call.1} parent=5 // pred_check_branch
        %376 = sbr.rel (%p374) target = $region48
      $region47: #{tpu_custom_call.1} parent=5 // pred_region
        %s377 = ssub.s32 %s15, 2
        // Predicated region
        $region49: #{tpu_custom_call.1} parent=47 // pred_check
          %p378 = pneg %p108
        $region50: #{tpu_custom_call.1} parent=47 // pred_check_branch
          %380 = sbr.rel (%p378) target = $region52
        $region51: #{tpu_custom_call.1} parent=47 // pred_region
          %s381 = sand.u32 %s93, 1
          %s382 = scalar_lea.sflag [#allocation4], %s381
          %s383 = sand.u32 %s93, 1
          %s384 = smul.addr %s383, 8
          %s385 = scalar_lea.vmem [#allocation7], %s384
          %386 = dma.done %s382, 128
        $region52: #{tpu_custom_call.1} parent=47 // pred_fallthru
          _
      $region48: #{tpu_custom_call.1} parent=5 // pred_fallthru
        _
    $region6: #{tpu_custom_call.1} parent=1 // loop_footer
      %s19 = sadd.s32 1, %s15
    $region7: #{tpu_custom_call.1} parent=1 // loop_footer_branch
      %14 = sbr.rel target = $region3
    $region8: #{tpu_custom_call.1} parent=1 // loop_exit
      _
    %387 = vsyncpa [#allocation3], 1
    %s388 = scalar_lea.sflag [#allocation3], 1
    %389 = vsyncpa %s388, 1
    %390 = vsyncpa [#allocation6], 1
    %391 = vsyncpa [#allocation4], 1
    %s392 = scalar_lea.sflag [#allocation4], 1
    %393 = vsyncpa %s392, 1

</llo_original>
